<compile_context>
chip_gen: v5e
topology: v5e:2x2
jax: 0.10.0
libtpu: 0.0.40
codegen_flags: <defaults>
</compile_context>

<pallas_src>
import jax
import jax.numpy as jnp
from jax.experimental import pallas as pl
from jax.experimental.pallas import tpu as pltpu


def _round_up(x, m):
    return ((x + m - 1) // m) * m


def _sublane(dtype):
    """Minimum sublane multiple for a dtype (sub-32-bit dtypes pack along sublanes)."""
    return {4: 8, 2: 16, 1: 32}.get(jnp.dtype(dtype).itemsize, 8)


# ----------------------------------------------------------------------------
# Kernels
# ----------------------------------------------------------------------------
def _linear_kernel_acc_in_out(x_ref, w_ref, b_ref, o_ref):
    """float32 output: the K-resident output block IS the accumulator."""
    k = pl.program_id(2)

    @pl.when(k == 0)
    def _():
        o_ref[...] = jnp.zeros_like(o_ref)

    # MXU-native [tm, tk] x [tk, tn] contraction, f32 accumulation.
    o_ref[...] += jnp.dot(x_ref[...], w_ref[...],
                          preferred_element_type=jnp.float32)

    @pl.when(k == pl.num_programs(2) - 1)
    def _():
        o_ref[...] += b_ref[...].astype(jnp.float32)   # bias exactly once


def _linear_kernel_acc_scratch(x_ref, w_ref, b_ref, o_ref, acc_ref):
    """Low-precision output: keep a float32 accumulator scratch, cast once."""
    k = pl.program_id(2)

    @pl.when(k == 0)
    def _():
        acc_ref[...] = jnp.zeros_like(acc_ref)

    acc_ref[...] += jnp.dot(x_ref[...], w_ref[...],
                            preferred_element_type=jnp.float32)

    @pl.when(k == pl.num_programs(2) - 1)
    def _():
        o_ref[...] = (acc_ref[...] + b_ref[...].astype(jnp.float32)).astype(o_ref.dtype)


# ----------------------------------------------------------------------------
# One-time parameter prep (run at load time, not per forward call)
# ----------------------------------------------------------------------------
def prepare_linear_cls_params(weight, bias, *, compute_dtype=None, tk_max=2048):
    """Lay out the classifier parameters once.

    * weight [D_out, D_in] (PyTorch layout) -> [K_pad, D_out] so the kernel
      gets the MXU's native [K, N] RHS feed.
    * Only K is zero-padded (to a 128-multiple tile that divides it evenly);
      zeros contribute nothing to the matmul.
    * compute_dtype=jnp.bfloat16 stores the weight in bf16: half the HBM
      traffic and bf16 MXU peak on v6e/v7x (f32 accumulation kept in-kernel).
    """
    D_out, D_in = weight.shape
    if compute_dtype is None:
        compute_dtype = weight.dtype
    compute_dtype = jnp.dtype(compute_dtype)

    k_pad = _round_up(D_in, 128)
    tk_cap = max(128, _round_up(min(tk_max, k_pad), 128))
    # Largest multiple of 128 that divides k_pad and is <= tk_cap.
    tk = 128
    for cand in range(tk_cap // 128, 0, -1):
        if (k_pad // 128) % cand == 0:
            tk = cand * 128
            break

    w_kn = jnp.asarray(weight).T.astype(compute_dtype)            # [D_in, D_out]
    if k_pad != D_in:
        w_kn = jnp.pad(w_kn, ((0, k_pad - D_in), (0, 0)))          # zero K tail
    b_row = jnp.asarray(bias).astype(jnp.float32).reshape(1, D_out)

    return dict(w_kn=w_kn, b_row=b_row, d_in=D_in, d_out=D_out,
                k_pad=k_pad, tk=tk, compute_dtype=compute_dtype)


# ----------------------------------------------------------------------------
# Forward
# ----------------------------------------------------------------------------
def linear_cls_forward_pallas(x, params, *, tm=512, tn=512, weight_buffers=None,
                              out_dtype=None):
    """logits = x @ W^T + b with a tiled (M, N, K) grid over prepared params."""
    B, D_in = x.shape
    assert D_in == params["d_in"], "x last dim must equal input_size"
    D_out = params["d_out"]
    K_p = params["k_pad"]
    tk = params["tk"]
    cdt = params["compute_dtype"]
    w_kn = params["w_kn"]
    b_row = params["b_row"]
    if out_dtype is None:
        out_dtype = x.dtype
    out_dtype = jnp.dtype(out_dtype)

    # dtype-aware sublane rounding for the M (batch) tile.
    sub = max(_sublane(cdt), _sublane(out_dtype))
    tm = _round_up(min(tm, _round_up(B, sub)), sub)
    tn = _round_up(min(tn, _round_up(D_out, 128)), 128)

    # Only the contraction dim of x needs zero-padding (cheap; x is small for a
    # classifier head). M/N edges are handled by the cdiv grid + masked stores.
    if K_p != D_in:
        x = jnp.pad(x, ((0, 0), (0, K_p - D_in)))
    x = x.astype(cdt)

    grid = (pl.cdiv(B, tm), pl.cdiv(D_out, tn), K_p // tk)
    gm, gn, gk = grid

    use_scratch = out_dtype != jnp.dtype(jnp.float32)
    kernel = _linear_kernel_acc_scratch if use_scratch else _linear_kernel_acc_in_out
    scratch = [pltpu.VMEM((tm, tn), jnp.float32)] if use_scratch else []

    w_spec_kwargs = {}
    if weight_buffers is not None and weight_buffers != 2:
        # Cheap sweep knob: deeper weight buffering for the weight-streaming
        # (small-batch) regime where per-step compute < weight-tile DMA.
        w_spec_kwargs["pipeline_mode"] = pl.Buffered(weight_buffers)

    csize = jnp.dtype(cdt).itemsize
    osize = out_dtype.itemsize
    wbufs = weight_buffers if weight_buffers else 2
    vmem_need = (2 * tm * tk * csize            # x double buffer
                 + wbufs * tk * tn * csize      # weight buffers
                 + 2 * tn * 4                   # bias
                 + 2 * tm * tn * osize          # output
                 + (tm * tn * 4 if use_scratch else 0))
    # Explicit VMEM budget: above v5e's 16 MiB scoped default, well below
    # v7x's 64 MiB-per-TensorCore physical VMEM.
    vmem_limit = min(48 << 20, max(32 << 20, int(vmem_need * 3 // 2) + (2 << 20)))

    cost = pl.CostEstimate(
        flops=2 * B * K_p * D_out,
        transcendentals=0,
        # Count tile revisits: x re-read once per N tile, W/b once per M tile.
        bytes_accessed=(x.size * csize * gn
                        + w_kn.size * csize * gm
                        + b_row.size * 4 * gm
                        + B * D_out * osize),
    )

    return pl.pallas_call(
        kernel,
        out_shape=jax.ShapeDtypeStruct((B, D_out), out_dtype),
        grid_spec=pltpu.PrefetchScalarGridSpec(
            num_scalar_prefetch=0,
            grid=grid,
            in_specs=[
                pl.BlockSpec((tm, tk), lambda i, j, k: (i, k)),                   # x
                pl.BlockSpec((tk, tn), lambda i, j, k: (k, j), **w_spec_kwargs),  # W [K,N]
                pl.BlockSpec((1, tn), lambda i, j, k: (0, j)),                    # bias
            ],
            out_specs=pl.BlockSpec((tm, tn), lambda i, j, k: (i, j)),
            scratch_shapes=scratch,
        ),
        compiler_params=pltpu.CompilerParams(
            # K is a serial reduction (output tile resident across it).
            # TODO(synk): sweep pltpu.CORE_PARALLEL on the N axis for large
            # D_out heads on v7x (2 TensorCores/chip).
            dimension_semantics=("parallel", "parallel", "arbitrary"),
            vmem_limit_bytes=vmem_limit,
        ),
        cost_estimate=cost,
    )(x, w_kn, b_row)


def linear_cls_forward(x, weight, bias, *, use_pallas=None, compute_dtype=None,
                       params=None, **kwargs):
    """Eval-mode LinearCLS forward: dropout is identity, logits = x @ W^T + b.

    use_pallas=None auto-dispatches: tiny problems go to fused XLA, where the
    per-grid-step + launch overhead of any hand kernel would dominate.
    For repeated calls, pass params=prepare_linear_cls_params(weight, bias)
    so the one-time weight layout is not redone per forward.
    """
    B, D_in = x.shape
    D_out = weight.shape[0]
    if use_pallas is None:
        use_pallas = (2 * B * D_in * D_out) >= (1 << 22)   # ~4 MFLOP threshold
    if not use_pallas:
        return (x @ weight.T + bias).astype(x.dtype)
    if params is None:
        params = prepare_linear_cls_params(weight, bias, compute_dtype=compute_dtype)
    return linear_cls_forward_pallas(x, params, **kwargs)


if __name__ == "__main__":
    # Small, module-consistent shapes: batch=16, input_size=320, output_size=200.
    B, D_in, D_out = 16, 320, 200
    dropout_rate = 0.1  # inert in eval mode

    key = jax.random.PRNGKey(0)
    kx, kw, kb = jax.random.split(key, 3)
    bound = 1.0 / (D_in ** 0.5)
    weight = jax.random.uniform(kw, (D_out, D_in), jnp.float32, -bound, bound)
    bias = jax.random.uniform(kb, (D_out,), jnp.float32, -bound, bound)
    x = jax.random.normal(kx, (B, D_in), jnp.float32)
    ref = x @ weight.T + bias

    # 1) f32 path with one-time param prep and default (large) tiles.
    params_f32 = prepare_linear_cls_params(weight, bias)
    out = linear_cls_forward_pallas(x, params_f32)
    jax.block_until_ready(out)
    assert out.shape == (B, D_out) and out.dtype == jnp.float32
    assert jnp.allclose(out, ref, atol=1e-4, rtol=1e-4), (
        float(jnp.max(jnp.abs(out - ref))))

    # 2) Small tiles + small tk -> multi-step (M, N, K) grid with cdiv edges on
    #    M/N; exercises K-resident accumulation and the bias epilogue.
    params_small_k = prepare_linear_cls_params(weight, bias, tk_max=128)
    out_tiled = linear_cls_forward_pallas(x, params_small_k, tm=8, tn=128)
    jax.block_until_ready(out_tiled)
    assert jnp.allclose(out_tiled, ref, atol=1e-4, rtol=1e-4), (
        float(jnp.max(jnp.abs(out_tiled - ref))))

    # 3) bf16 MXU feed (v6e/v7x peak, half the weight HBM traffic), f32
    #    accumulation, bf16 output -> exercises the f32-scratch kernel.
    params_bf16 = prepare_linear_cls_params(weight, bias, compute_dtype=jnp.bfloat16)
    out_bf16 = linear_cls_forward_pallas(x.astype(jnp.bfloat16), params_bf16,
                                         tm=8, tn=128)
    jax.block_until_ready(out_bf16)
    assert out_bf16.dtype == jnp.bfloat16
    assert jnp.allclose(out_bf16.astype(jnp.float32), ref, atol=3e-2, rtol=3e-2), (
        float(jnp.max(jnp.abs(out_bf16.astype(jnp.float32) - ref))))

    # 4) Auto-dispatch convenience wrapper (tiny problem -> fused XLA) agrees.
    out_auto = linear_cls_forward(x, weight, bias)
    jax.block_until_ready(out_auto)
    assert jnp.allclose(out_auto, ref, atol=1e-4, rtol=1e-4)

    print("KERNEL_OK")
</pallas_src>

<mosaic_0001>
module attributes {stable_mosaic.version = 11 : i64} {
  func.func @_linear_kernel_acc_in_out(%arg0: i32, %arg1: i32, %arg2: i32, %arg3: memref<16x384xf32, #tpu.memory_space<vmem>>, %arg4: memref<384x256xf32, #tpu.memory_space<vmem>>, %arg5: memref<1x256xf32, #tpu.memory_space<vmem>>, %arg6: memref<16x256xf32, #tpu.memory_space<vmem>>) attributes {dimension_semantics = [#tpu.dimension_semantics<parallel>, #tpu.dimension_semantics<parallel>, #tpu.dimension_semantics<arbitrary>], iteration_bounds = array<i64: 1, 1, 1>, scalar_prefetch = 0 : i64, scratch_operands = 0 : i64, tpu.core_type = #tpu.core_type<tc>, window_params = [{transform_indices = @transform_0, window_bounds = array<i64: 16, 384>}, {transform_indices = @transform_1, window_bounds = array<i64: 384, 256>}, {transform_indices = @transform_2, window_bounds = array<i64: 1, 256>}, {transform_indices = @transform_3, window_bounds = array<i64: 16, 256>}]} {
    %c0_i32 = arith.constant 0 : i32
    %0 = arith.cmpi eq, %arg2, %c0_i32 : i32
    %1 = arith.extui %0 : i1 to i32
    %c0_i32_0 = arith.constant 0 : i32
    %2 = arith.cmpi ne, %1, %c0_i32_0 : i32
    scf.if %2 {
      %cst_10 = arith.constant 0.000000e+00 : f32
      %12 = vector.broadcast %cst_10 : f32 to vector<16x256xf32>
      %c0_11 = arith.constant 0 : index
      %c0_12 = arith.constant 0 : index
      %13 = vector.load %arg6[%c0_11, %c0_12] : memref<16x256xf32, #tpu.memory_space<vmem>>, vector<16x256xf32>
      tpu.vector_store %arg6[%c0_11, %c0_12], %12 {strides = array<i32>} : memref<16x256xf32, #tpu.memory_space<vmem>>, vector<16x256xf32>,
    } else {
    }
    %c0 = arith.constant 0 : index
    %c0_1 = arith.constant 0 : index
    %3 = vector.load %arg6[%c0, %c0_1] : memref<16x256xf32, #tpu.memory_space<vmem>>, vector<16x256xf32>
    %c0_2 = arith.constant 0 : index
    %c0_3 = arith.constant 0 : index
    %4 = vector.load %arg3[%c0_2, %c0_3] : memref<16x384xf32, #tpu.memory_space<vmem>>, vector<16x384xf32>
    %c0_4 = arith.constant 0 : index
    %c0_5 = arith.constant 0 : index
    %5 = vector.load %arg4[%c0_4, %c0_5] : memref<384x256xf32, #tpu.memory_space<vmem>>, vector<384x256xf32>
    %cst = arith.constant dense<0.000000e+00> : vector<16x256xf32>
    %6 = tpu.matmul %4, %5, %cst {dimension_numbers = #tpu.dot_dimension_numbers<[1], [0], [0], [1], [0, 0, 1, 1], [], []>} : vector<16x384xf32>, vector<384x256xf32>, vector<16x256xf32> -> vector<16x256xf32>
    %7 = arith.addf %3, %6 : vector<16x256xf32>
    %c0_6 = arith.constant 0 : index
    %c0_7 = arith.constant 0 : index
    %8 = vector.load %arg6[%c0_6, %c0_7] : memref<16x256xf32, #tpu.memory_space<vmem>>, vector<16x256xf32>
    tpu.vector_store %arg6[%c0_6, %c0_7], %7 {strides = array<i32>} : memref<16x256xf32, #tpu.memory_space<vmem>>, vector<16x256xf32>,
    %c0_i32_8 = arith.constant 0 : i32
    %9 = arith.cmpi eq, %arg2, %c0_i32_8 : i32
    %10 = arith.extui %9 : i1 to i32
    %c0_i32_9 = arith.constant 0 : i32
    %11 = arith.cmpi ne, %10, %c0_i32_9 : i32
    scf.if %11 {
      %c0_10 = arith.constant 0 : index
      %c0_11 = arith.constant 0 : index
      %12 = vector.load %arg6[%c0_10, %c0_11] : memref<16x256xf32, #tpu.memory_space<vmem>>, vector<16x256xf32>
      %c0_12 = arith.constant 0 : index
      %c0_13 = arith.constant 0 : index
      %13 = vector.load %arg5[%c0_12, %c0_13] : memref<1x256xf32, #tpu.memory_space<vmem>>, vector<1x256xf32>
      %14 = vector.broadcast %13 : vector<1x256xf32> to vector<16x256xf32>
      %15 = arith.addf %12, %14 : vector<16x256xf32>
      %c0_14 = arith.constant 0 : index
      %c0_15 = arith.constant 0 : index
      %16 = vector.load %arg6[%c0_14, %c0_15] : memref<16x256xf32, #tpu.memory_space<vmem>>, vector<16x256xf32>
      tpu.vector_store %arg6[%c0_14, %c0_15], %15 {strides = array<i32>} : memref<16x256xf32, #tpu.memory_space<vmem>>, vector<16x256xf32>,
    } else {
    }
    return
  }
  func.func @transform_0(%arg0: i32, %arg1: i32, %arg2: i32) -> (i32, i32) {
    %c0_i32 = arith.constant 0 : i32
    return %arg0, %arg2 : i32, i32
  }
  func.func @transform_1(%arg0: i32, %arg1: i32, %arg2: i32) -> (i32, i32) {
    %c0_i32 = arith.constant 0 : i32
    return %arg2, %arg1 : i32, i32
  }
  func.func @transform_2(%arg0: i32, %arg1: i32, %arg2: i32) -> (i32, i32) {
    %c0_i32 = arith.constant 0 : i32
    %c0_i32_0 = arith.constant 0 : i32
    return %c0_i32, %arg1 : i32, i32
  }
  func.func @transform_3(%arg0: i32, %arg1: i32, %arg2: i32) -> (i32, i32) {
    %c0_i32 = arith.constant 0 : i32
    return %arg0, %arg1 : i32, i32
  }
}

</mosaic_0001>

<llo_original>
// kernel: tpu_custom_call.1
$region0: #{tpu_custom_call.1}
  #allocation0 [shape = 'u32[]', space=smem, size = 0x4, offset = 0x4, fixed_abs, tag = 'smem constant byte address 0x4 - core index']
  #allocation1 [shape = 'u32[72,128]{1,0:T(1,128)}', space=vmem, size = 0x9000, scoped, tag = 'internal scratch']
  %s0 = inlined_call_operand.vmem [shape: f32[16,384], index: 0, kind: input, shape index: {}]
  %s1 = inlined_call_operand.vmem [shape: f32[384,200], index: 1, kind: input, shape index: {}]
  %s2 = inlined_call_operand.vmem [shape: f32[1,200], index: 2, kind: input, shape index: {}]
  %s3 = inlined_call_operand.hbm [shape: f32[16,200], index: 3, kind: output, shape index: {}]
  %s4 = sld [smem:[#allocation0]]
  $region30: #{tpu_custom_call.1} parent=0
    _
  %s6 = ssub.s32 1, %s4
  %s7 = scalar_select 0, %s6, %s4
  $region1: #{tpu_custom_call.1} parent=0
    #allocation2 [shape = 'u8[16384]{0}', space=vmem, size = 0x4000, scoped, tag = 'output window, operand 0, single buffered']
    #allocation3 [shape = 's32[1]{0}', space=sflag, size = 0x4, scoped, tag = 'scoped memory for tpu_custom_call.1']
    %8 = vsyncpa [#allocation3], 0
    // Predicated region
    $region2: #{tpu_custom_call.1} parent=1 // pred_check
      _
    $region3: #{tpu_custom_call.1} parent=1 // pred_check_branch
      %10 = sbr.rel (0) target = $region5
    $region4: #{tpu_custom_call.1} parent=1 // pred_region
      _
    $region5: #{tpu_custom_call.1} parent=1 // pred_fallthru
      _
    // Predicated region
    $region6: #{tpu_custom_call.1} parent=1 // pred_check
      _
    $region7: #{tpu_custom_call.1} parent=1 // pred_check_branch
      %12 = sbr.rel (0) target = $region9
    $region8: #{tpu_custom_call.1} parent=1 // pred_region
      _
    $region9: #{tpu_custom_call.1} parent=1 // pred_fallthru
      _
    // Predicated region
    $region10: #{tpu_custom_call.1} parent=1 // pred_check
      _
    $region11: #{tpu_custom_call.1} parent=1 // pred_check_branch
      %14 = sbr.rel (0) target = $region13
    $region12: #{tpu_custom_call.1} parent=1 // pred_region
      _
    $region13: #{tpu_custom_call.1} parent=1 // pred_fallthru
      _
    %p15 = scmp.eq.s32.totalorder 0, 0
    // Predicated region
    $region14: #{tpu_custom_call.1} parent=1 // pred_check
      %p16 = pneg %p15
    $region15: #{tpu_custom_call.1} parent=1 // pred_check_branch
      %18 = sbr.rel (%p16) target = $region17
    $region16: #{tpu_custom_call.1} parent=1 // pred_region
      %19 = vst [vmem:[#allocation2] sm:$0xff] 0.0
      %20 = vst [vmem:[#allocation2 + $0x8] sm:$0xff] 0.0
      %21 = vst [vmem:[#allocation2 + $0x10] sm:$0xff] 0.0
      %22 = vst [vmem:[#allocation2 + $0x18] sm:$0xff] 0.0
    $region17: #{tpu_custom_call.1} parent=1 // pred_fallthru
      _
    %v23 = vld [vmem:[#allocation2] sm:$0xff]
    %v24 = vld [vmem:[#allocation2 + $0x8] sm:$0xff]
    %v25 = vld [vmem:[#allocation2 + $0x10] sm:$0xff]
    %v26 = vld [vmem:[#allocation2 + $0x18] sm:$0xff]
    %v27 = vld [vmem:[%s0] sm:$0xff]
    %v28 = vld [vmem:[%s0 + $0x8] sm:$0xff]
    %v29 = vld [vmem:[%s0 + $0x10] sm:$0xff]
    %v30 = vld [vmem:[%s0 + $0x18] sm:$0xff]
    %v31 = vld [vmem:[%s0 + $0x20] sm:$0xff]
    %v32 = vld [vmem:[%s0 + $0x28] sm:$0xff]
    %v33 = vld [vmem:[%s1] sm:$0xff]
    %v34 = vld [vmem:[%s1 + $0x8] sm:$0xff]
    %v35 = vld [vmem:[%s1 + $0x10] sm:$0xff]
    %v36 = vld [vmem:[%s1 + $0x18] sm:$0xff]
    %v37 = vld [vmem:[%s1 + $0x20] sm:$0xff]
    %v38 = vld [vmem:[%s1 + $0x28] sm:$0xff]
    %v39 = vld [vmem:[%s1 + $0x30] sm:$0xff]
    %v40 = vld [vmem:[%s1 + $0x38] sm:$0xff]
    %v41 = vld [vmem:[%s1 + $0x40] sm:$0xff]
    %v42 = vld [vmem:[%s1 + $0x48] sm:$0xff]
    %v43 = vld [vmem:[%s1 + $0x50] sm:$0xff]
    %v44 = vld [vmem:[%s1 + $0x58] sm:$0xff]
    %v45 = vld [vmem:[%s1 + $0x60] sm:$0xff]
    %v46 = vld [vmem:[%s1 + $0x68] sm:$0xff]
    %v47 = vld [vmem:[%s1 + $0x70] sm:$0xff]
    %v48 = vld [vmem:[%s1 + $0x78] sm:$0xff]
    %v49 = vld [vmem:[%s1 + $0x80] sm:$0xff]
    %v50 = vld [vmem:[%s1 + $0x88] sm:$0xff]
    %v51 = vld [vmem:[%s1 + $0x90] sm:$0xff]
    %v52 = vld [vmem:[%s1 + $0x98] sm:$0xff]
    %v53 = vld [vmem:[%s1 + $0xa0] sm:$0xff]
    %v54 = vld [vmem:[%s1 + $0xa8] sm:$0xff]
    %v55 = vld [vmem:[%s1 + $0xb0] sm:$0xff]
    %v56 = vld [vmem:[%s1 + $0xb8] sm:$0xff]
    %v57 = vld [vmem:[%s1 + $0xc0] sm:$0xff]
    %v58 = vld [vmem:[%s1 + $0xc8] sm:$0xff]
    %v59 = vld [vmem:[%s1 + $0xd0] sm:$0xff]
    %v60 = vld [vmem:[%s1 + $0xd8] sm:$0xff]
    %v61 = vld [vmem:[%s1 + $0xe0] sm:$0xff]
    %v62 = vld [vmem:[%s1 + $0xe8] sm:$0xff]
    %v63 = vld [vmem:[%s1 + $0xf0] sm:$0xff]
    %v64 = vld [vmem:[%s1 + $0xf8] sm:$0xff]
    %v65 = vld [vmem:[%s1 + $0x100] sm:$0xff]
    %v66 = vld [vmem:[%s1 + $0x108] sm:$0xff]
    %v67 = vld [vmem:[%s1 + $0x110] sm:$0xff]
    %v68 = vld [vmem:[%s1 + $0x118] sm:$0xff]
    %v69 = vld [vmem:[%s1 + $0x120] sm:$0xff]
    %v70 = vld [vmem:[%s1 + $0x128] sm:$0xff]
    %v71 = vld [vmem:[%s1 + $0x130] sm:$0xff]
    %v72 = vld [vmem:[%s1 + $0x138] sm:$0xff]
    %v73 = vld [vmem:[%s1 + $0x140] sm:$0xff]
    %v74 = vld [vmem:[%s1 + $0x148] sm:$0xff]
    %v75 = vld [vmem:[%s1 + $0x150] sm:$0xff]
    %v76 = vld [vmem:[%s1 + $0x158] sm:$0xff]
    %v77 = vld [vmem:[%s1 + $0x160] sm:$0xff]
    %v78 = vld [vmem:[%s1 + $0x168] sm:$0xff]
    %v79 = vld [vmem:[%s1 + $0x170] sm:$0xff]
    %v80 = vld [vmem:[%s1 + $0x178] sm:$0xff]
    %v81 = vld [vmem:[%s1 + $0x180] sm:$0xff]
    %v82 = vld [vmem:[%s1 + $0x188] sm:$0xff]
    %v83 = vld [vmem:[%s1 + $0x190] sm:$0xff]
    %v84 = vld [vmem:[%s1 + $0x198] sm:$0xff]
    %v85 = vld [vmem:[%s1 + $0x1a0] sm:$0xff]
    %v86 = vld [vmem:[%s1 + $0x1a8] sm:$0xff]
    %v87 = vld [vmem:[%s1 + $0x1b0] sm:$0xff]
    %v88 = vld [vmem:[%s1 + $0x1b8] sm:$0xff]
    %v89 = vld [vmem:[%s1 + $0x1c0] sm:$0xff]
    %v90 = vld [vmem:[%s1 + $0x1c8] sm:$0xff]
    %v91 = vld [vmem:[%s1 + $0x1d0] sm:$0xff]
    %v92 = vld [vmem:[%s1 + $0x1d8] sm:$0xff]
    %v93 = vld [vmem:[%s1 + $0x1e0] sm:$0xff]
    %v94 = vld [vmem:[%s1 + $0x1e8] sm:$0xff]
    %v95 = vld [vmem:[%s1 + $0x1f0] sm:$0xff]
    %v96 = vld [vmem:[%s1 + $0x1f8] sm:$0xff]
    %v97 = vld [vmem:[%s1 + $0x200] sm:$0xff]
    %v98 = vld [vmem:[%s1 + $0x208] sm:$0xff]
    %v99 = vld [vmem:[%s1 + $0x210] sm:$0xff]
    %v100 = vld [vmem:[%s1 + $0x218] sm:$0xff]
    %v101 = vld [vmem:[%s1 + $0x220] sm:$0xff]
    %v102 = vld [vmem:[%s1 + $0x228] sm:$0xff]
    %v103 = vld [vmem:[%s1 + $0x230] sm:$0xff]
    %v104 = vld [vmem:[%s1 + $0x238] sm:$0xff]
    %v105 = vld [vmem:[%s1 + $0x240] sm:$0xff]
    %v106 = vld [vmem:[%s1 + $0x248] sm:$0xff]
    %v107 = vld [vmem:[%s1 + $0x250] sm:$0xff]
    %v108 = vld [vmem:[%s1 + $0x258] sm:$0xff]
    %v109 = vld [vmem:[%s1 + $0x260] sm:$0xff]
    %v110 = vld [vmem:[%s1 + $0x268] sm:$0xff]
    %v111 = vld [vmem:[%s1 + $0x270] sm:$0xff]
    %v112 = vld [vmem:[%s1 + $0x278] sm:$0xff]
    %v113 = vld [vmem:[%s1 + $0x280] sm:$0xff]
    %v114 = vld [vmem:[%s1 + $0x288] sm:$0xff]
    %v115 = vld [vmem:[%s1 + $0x290] sm:$0xff]
    %v116 = vld [vmem:[%s1 + $0x298] sm:$0xff]
    %v117 = vld [vmem:[%s1 + $0x2a0] sm:$0xff]
    %v118 = vld [vmem:[%s1 + $0x2a8] sm:$0xff]
    %v119 = vld [vmem:[%s1 + $0x2b0] sm:$0xff]
    %v120 = vld [vmem:[%s1 + $0x2b8] sm:$0xff]
    %v121 = vld [vmem:[%s1 + $0x2c0] sm:$0xff]
    %v122 = vld [vmem:[%s1 + $0x2c8] sm:$0xff]
    %v123 = vld [vmem:[%s1 + $0x2d0] sm:$0xff]
    %v124 = vld [vmem:[%s1 + $0x2d8] sm:$0xff]
    %v125 = vld [vmem:[%s1 + $0x2e0] sm:$0xff]
    %v126 = vld [vmem:[%s1 + $0x2e8] sm:$0xff]
    %v127 = vld [vmem:[%s1 + $0x2f0] sm:$0xff]
    %v128 = vld [vmem:[%s1 + $0x2f8] sm:$0xff]
    %129 = vmatpush.msra.mxu0 %v63
    %130 = vmatpush.msra.mxu0 %v61
    %131 = vmatpush.msra.mxu0 %v59
    %132 = vmatpush.msra.mxu0 %v57
    %133 = vmatpush.msra.mxu0 %v55
    %134 = vmatpush.msra.mxu0 %v53
    %135 = vmatpush.msra.mxu0 %v51
    %136 = vmatpush.msra.mxu0 %v49
    %137 = vmatpush.msra.mxu0 %v47
    %138 = vmatpush.msra.mxu0 %v45
    %139 = vmatpush.msra.mxu0 %v43
    %140 = vmatpush.msra.mxu0 %v41
    %141 = vmatpush.msra.mxu0 %v39
    %142 = vmatpush.msra.mxu0 %v37
    %143 = vmatpush.msra.mxu0 %v35
    %144 = vmatpush.msra.mxu0 %v33
    %145 = vmatmul.f32.gmra.mxu0 %v27
    %v146 = vpop.f32.mrf.mxu0
    %v147 = vadd.f32 0.0, %v146
    %148 = vmatmul.f32.gmra.mxu0 %v30
    %v149 = vpop.f32.mrf.mxu0
    %v150 = vadd.f32 0.0, %v149
    %151 = vdwg.mxu0
    %152 = vmatpush.msra.mxu0 %v95
    %153 = vmatpush.msra.mxu0 %v93
    %154 = vmatpush.msra.mxu0 %v91
    %155 = vmatpush.msra.mxu0 %v89
    %156 = vmatpush.msra.mxu0 %v87
    %157 = vmatpush.msra.mxu0 %v85
    %158 = vmatpush.msra.mxu0 %v83
    %159 = vmatpush.msra.mxu0 %v81
    %160 = vmatpush.msra.mxu0 %v79
    %161 = vmatpush.msra.mxu0 %v77
    %162 = vmatpush.msra.mxu0 %v75
    %163 = vmatpush.msra.mxu0 %v73
    %164 = vmatpush.msra.mxu0 %v71
    %165 = vmatpush.msra.mxu0 %v69
    %166 = vmatpush.msra.mxu0 %v67
    %167 = vmatpush.msra.mxu0 %v65
    %168 = vmatmul.f32.gmra.mxu0 %v28
    %v169 = vpop.f32.mrf.mxu0
    %v170 = vadd.f32 %v147, %v169
    %171 = vmatmul.f32.gmra.mxu0 %v31
    %v172 = vpop.f32.mrf.mxu0
    %v173 = vadd.f32 %v150, %v172
    %174 = vdwg.mxu0
    %175 = vmatpush.msra.mxu0 %v127
    %176 = vmatpush.msra.mxu0 %v125
    %177 = vmatpush.msra.mxu0 %v123
    %178 = vmatpush.msra.mxu0 %v121
    %179 = vmatpush.msra.mxu0 %v119
    %180 = vmatpush.msra.mxu0 %v117
    %181 = vmatpush.msra.mxu0 %v115
    %182 = vmatpush.msra.mxu0 %v113
    %183 = vmatpush.msra.mxu0 %v111
    %184 = vmatpush.msra.mxu0 %v109
    %185 = vmatpush.msra.mxu0 %v107
    %186 = vmatpush.msra.mxu0 %v105
    %187 = vmatpush.msra.mxu0 %v103
    %188 = vmatpush.msra.mxu0 %v101
    %189 = vmatpush.msra.mxu0 %v99
    %190 = vmatpush.msra.mxu0 %v97
    %191 = vmatmul.f32.gmra.mxu0 %v29
    %v192 = vpop.f32.mrf.mxu0
    %v193 = vadd.f32 %v170, %v192
    %194 = vmatmul.f32.gmra.mxu0 %v32
    %v195 = vpop.f32.mrf.mxu0
    %v196 = vadd.f32 %v173, %v195
    %197 = vdwg.mxu0
    %198 = vmatpush.msra.mxu0 %v64
    %199 = vmatpush.msra.mxu0 %v62
    %200 = vmatpush.msra.mxu0 %v60
    %201 = vmatpush.msra.mxu0 %v58
    %202 = vmatpush.msra.mxu0 %v56
    %203 = vmatpush.msra.mxu0 %v54
    %204 = vmatpush.msra.mxu0 %v52
    %205 = vmatpush.msra.mxu0 %v50
    %206 = vmatpush.msra.mxu0 %v48
    %207 = vmatpush.msra.mxu0 %v46
    %208 = vmatpush.msra.mxu0 %v44
    %209 = vmatpush.msra.mxu0 %v42
    %210 = vmatpush.msra.mxu0 %v40
    %211 = vmatpush.msra.mxu0 %v38
    %212 = vmatpush.msra.mxu0 %v36
    %213 = vmatpush.msra.mxu0 %v34
    %214 = vmatmul.f32.gmra.mxu0 %v27
    %v215 = vpop.f32.mrf.mxu0
    %v216 = vadd.f32 0.0, %v215
    %217 = vmatmul.f32.gmra.mxu0 %v30
    %v218 = vpop.f32.mrf.mxu0
    %v219 = vadd.f32 0.0, %v218
    %220 = vdwg.mxu0
    %221 = vmatpush.msra.mxu0 %v96
    %222 = vmatpush.msra.mxu0 %v94
    %223 = vmatpush.msra.mxu0 %v92
    %224 = vmatpush.msra.mxu0 %v90
    %225 = vmatpush.msra.mxu0 %v88
    %226 = vmatpush.msra.mxu0 %v86
    %227 = vmatpush.msra.mxu0 %v84
    %228 = vmatpush.msra.mxu0 %v82
    %229 = vmatpush.msra.mxu0 %v80
    %230 = vmatpush.msra.mxu0 %v78
    %231 = vmatpush.msra.mxu0 %v76
    %232 = vmatpush.msra.mxu0 %v74
    %233 = vmatpush.msra.mxu0 %v72
    %234 = vmatpush.msra.mxu0 %v70
    %235 = vmatpush.msra.mxu0 %v68
    %236 = vmatpush.msra.mxu0 %v66
    %237 = vmatmul.f32.gmra.mxu0 %v28
    %v238 = vpop.f32.mrf.mxu0
    %v239 = vadd.f32 %v216, %v238
    %240 = vmatmul.f32.gmra.mxu0 %v31
    %v241 = vpop.f32.mrf.mxu0
    %v242 = vadd.f32 %v219, %v241
    %243 = vdwg.mxu0
    %244 = vmatpush.msra.mxu0 %v128
    %245 = vmatpush.msra.mxu0 %v126
    %246 = vmatpush.msra.mxu0 %v124
    %247 = vmatpush.msra.mxu0 %v122
    %248 = vmatpush.msra.mxu0 %v120
    %249 = vmatpush.msra.mxu0 %v118
    %250 = vmatpush.msra.mxu0 %v116
    %251 = vmatpush.msra.mxu0 %v114
    %252 = vmatpush.msra.mxu0 %v112
    %253 = vmatpush.msra.mxu0 %v110
    %254 = vmatpush.msra.mxu0 %v108
    %255 = vmatpush.msra.mxu0 %v106
    %256 = vmatpush.msra.mxu0 %v104
    %257 = vmatpush.msra.mxu0 %v102
    %258 = vmatpush.msra.mxu0 %v100
    %259 = vmatpush.msra.mxu0 %v98
    %260 = vmatmul.f32.gmra.mxu0 %v29
    %v261 = vpop.f32.mrf.mxu0
    %v262 = vadd.f32 %v239, %v261
    %263 = vmatmul.f32.gmra.mxu0 %v32
    %v264 = vpop.f32.mrf.mxu0
    %v265 = vadd.f32 %v242, %v264
    %266 = vdwg.mxu0
    %v267 = vadd.f32 %v23, %v193
    %v268 = vadd.f32 %v24, %v262
    %v269 = vadd.f32 %v25, %v196
    %v270 = vadd.f32 %v26, %v265
    %271 = vst [vmem:[#allocation2] sm:$0xff] %v267
    %272 = vst [vmem:[#allocation2 + $0x8] sm:$0xff] %v268
    %273 = vst [vmem:[#allocation2 + $0x10] sm:$0xff] %v269
    %274 = vst [vmem:[#allocation2 + $0x18] sm:$0xff] %v270
    // Predicated region
    $region18: #{tpu_custom_call.1} parent=1 // pred_check
      %p275 = pneg %p15
    $region19: #{tpu_custom_call.1} parent=1 // pred_check_branch
      %277 = sbr.rel (%p275) target = $region21
    $region20: #{tpu_custom_call.1} parent=1 // pred_region
      %v278 = vld [vmem:[#allocation2] sm:$0xff]
      %v279 = vld [vmem:[#allocation2 + $0x8] sm:$0xff]
      %v280 = vld [vmem:[#allocation2 + $0x10] sm:$0xff]
      %v281 = vld [vmem:[#allocation2 + $0x18] sm:$0xff]
      %v282 = vld [vmem:[%s2] sm:$0x3]
      %v284 = vperm.slane %v282, 0
      %v285 = vperm.slane %v282, 1
      %v288 = vadd.f32 %v278, %v284
      %v289 = vadd.f32 %v279, %v285
      %v290 = vadd.f32 %v280, %v284
      %v291 = vadd.f32 %v281, %v285
      %292 = vst [vmem:[#allocation2] sm:$0xff] %v288
      %293 = vst [vmem:[#allocation2 + $0x8] sm:$0xff] %v289
      %294 = vst [vmem:[#allocation2 + $0x10] sm:$0xff] %v290
      %295 = vst [vmem:[#allocation2 + $0x18] sm:$0xff] %v291
    $region21: #{tpu_custom_call.1} parent=1 // pred_fallthru
      _
    // Predicated region
    $region22: #{tpu_custom_call.1} parent=1 // pred_check
      _
    $region23: #{tpu_custom_call.1} parent=1 // pred_check_branch
      %297 = sbr.rel (0) target = $region25
    $region24: #{tpu_custom_call.1} parent=1 // pred_region
      %299 = vsyncadd [#allocation3], 0
      %s300 = sshll.u32 [#allocation2], 4
      %s301 = int_to_ptr.vmem [resolvable:$true] %s300
      %s302 = sshll.u32 %s3, 4
      %s303 = int_to_ptr.hbm [resolvable:$true] %s302
      %308 = dma.vmem_to_hbm [thread:$0]  %s301, 512, %s303, [#allocation3], 256, 256, 16
    $region25: #{tpu_custom_call.1} parent=1 // pred_fallthru
      _
    // Predicated region
    $region26: #{tpu_custom_call.1} parent=1 // pred_check
      _
    $region27: #{tpu_custom_call.1} parent=1 // pred_check_branch
      %310 = sbr.rel (0) target = $region29
    $region28: #{tpu_custom_call.1} parent=1 // pred_region
      %312 = dma.done [#allocation3], 512
    $region29: #{tpu_custom_call.1} parent=1 // pred_fallthru
      _
    %313 = vsyncpa [#allocation3], 1

</llo_original>
